<compile_context>
chip_gen: v6e
topology: v6e:2x2x1
jax: 0.10.0
libtpu: 0.0.40
codegen_flags: <defaults>
</compile_context>

<pallas_src>
import functools

import jax
import jax.numpy as jnp
from jax.experimental import pallas as pl
from jax.experimental.pallas import tpu as pltpu


def _round_up(x, m):
    return ((x + m - 1) // m) * m


def _focal_loss_kernel(y_pred_ref, y_true_ref, out_ref, *, gamma, w_p):
    y_pred = y_pred_ref[...]
    y_true = y_true_ref[...]

    p = jax.nn.sigmoid(y_pred)
    one_m_p = 1.0 - p

    # log(p.clamp(min=1e-8)) and log((1-p).clamp(min=1e-8)) — same as torch.
    log_p = jnp.log(jnp.maximum(p, 1e-8))
    log_1mp = jnp.log(jnp.maximum(one_m_p, 1e-8))

    if float(gamma).is_integer():
        # Integer exponent -> lax.integer_pow: repeated VPU multiplies, no EUP.
        g = int(gamma)
        pow_1mp = jnp.power(one_m_p, g)
        pow_p = jnp.power(p, g)
    else:
        # Generic (non-integer) gamma keeps the exp/log pow path.
        pow_1mp = jnp.power(one_m_p, gamma)
        pow_p = jnp.power(p, gamma)

    focal_pos = (-w_p) * pow_1mp * y_true * log_p
    focal_neg = -pow_p * (1.0 - y_true) * log_1mp
    out_ref[...] = focal_pos + focal_neg


def focal_loss(y_pred, y_true, *, gamma, pos_weight,
               block_rows=1024, block_cols=512):
    """Elementwise focal loss (returns array of same shape as y_pred)."""
    assert y_pred.shape == y_true.shape
    assert y_pred.ndim == 2
    B, N = y_pred.shape
    dtype = y_pred.dtype

    # Tile shapes: rows a multiple of 8 (f32 sublanes), cols a multiple of 128
    # (lanes), capped at (block_rows, block_cols) — big tiles amortize per-step
    # overhead while keeping 3 operands x 2 buffers well under VMEM limits.
    br = _round_up(B, 8) if B <= block_rows else block_rows
    bc = _round_up(N, 128) if N <= block_cols else block_cols

    # Pad up to tile multiples (robust to odd batch / label counts); padded
    # region is zeros (sigmoid(0)=0.5, finite math) and sliced off afterwards.
    Bp, Np = _round_up(B, br), _round_up(N, bc)
    if (Bp, Np) != (B, N):
        y_pred = jnp.pad(y_pred, ((0, Bp - B), (0, Np - N)))
        y_true = jnp.pad(y_true, ((0, Bp - B), (0, Np - N)))

    kernel = functools.partial(
        _focal_loss_kernel, gamma=float(gamma), w_p=float(pos_weight)
    )

    grid = (Bp // br, Np // bc)
    spec = pl.BlockSpec((br, bc), lambda i, j: (i, j))

    # 3 operands x double-buffered tiles (+ slack); keep <= 48 MiB so it is
    # safe on v7x's 64 MiB VMEM while still raising v5e's 16 MiB default.
    tile_bytes = br * bc * jnp.dtype(dtype).itemsize
    vmem_limit = int(min(48 << 20, max(32 << 20, 6 * tile_bytes + (8 << 20))))

    out = pl.pallas_call(
        kernel,
        out_shape=jax.ShapeDtypeStruct((Bp, Np), dtype),
        grid_spec=pltpu.PrefetchScalarGridSpec(
            num_scalar_prefetch=0,
            grid=grid,
            in_specs=[spec, spec],
            out_specs=spec,
        ),
        compiler_params=pltpu.CompilerParams(
            dimension_semantics=("parallel", "parallel"),
            vmem_limit_bytes=vmem_limit,
        ),
    )(y_pred, y_true)

    if (Bp, Np) != (B, N):
        out = out[:B, :N]
    return out


def focal_loss_ref(y_pred, y_true, *, gamma, pos_weight):
    """Pure-JAX reference mirroring the PyTorch forward exactly."""
    p = jax.nn.sigmoid(y_pred)
    pos = -pos_weight * (1.0 - p) ** gamma * y_true * jnp.log(jnp.maximum(p, 1e-8))
    neg = -(p ** gamma) * (1.0 - y_true) * jnp.log(jnp.maximum(1.0 - p, 1e-8))
    return pos + neg


if __name__ == "__main__":
    # Deterministic "module parameters" (from __init__): gamma, pos_weight.
    gamma = 2.0
    pos_weight = 3.0

    key = jax.random.PRNGKey(0)

    # Case 1: aligned small shape (batch=16, num_labels=128).
    k1, k2, k3, k4 = jax.random.split(key, 4)
    y_pred = jax.random.normal(k1, (16, 128), dtype=jnp.float32)
    y_true = (jax.random.uniform(k2, (16, 128)) > 0.5).astype(jnp.float32)

    out = focal_loss(y_pred, y_true, gamma=gamma, pos_weight=pos_weight)
    out = jax.block_until_ready(out)
    ref = focal_loss_ref(y_pred, y_true, gamma=gamma, pos_weight=pos_weight)
    assert out.shape == y_pred.shape and out.dtype == y_pred.dtype
    assert jnp.allclose(out, ref, atol=1e-5, rtol=1e-5), "mismatch vs reference (aligned)"

    # Case 2: unaligned shape (batch=10, num_labels=200) exercising the
    # pad-and-slice path (no divisibility assert anymore).
    y_pred2 = jax.random.normal(k3, (10, 200), dtype=jnp.float32)
    y_true2 = (jax.random.uniform(k4, (10, 200)) > 0.5).astype(jnp.float32)

    out2 = focal_loss(y_pred2, y_true2, gamma=gamma, pos_weight=pos_weight)
    out2 = jax.block_until_ready(out2)
    ref2 = focal_loss_ref(y_pred2, y_true2, gamma=gamma, pos_weight=pos_weight)
    assert out2.shape == y_pred2.shape and out2.dtype == y_pred2.dtype
    assert jnp.allclose(out2, ref2, atol=1e-5, rtol=1e-5), "mismatch vs reference (padded)"

    print("KERNEL_OK")
</pallas_src>

<mosaic_0001>
module attributes {stable_mosaic.version = 11 : i64} {
  func.func @_focal_loss_kernel(%arg0: i32, %arg1: i32, %arg2: memref<16x128xf32, #tpu.memory_space<vmem>>, %arg3: memref<16x128xf32, #tpu.memory_space<vmem>>, %arg4: memref<16x128xf32, #tpu.memory_space<vmem>>) attributes {dimension_semantics = [#tpu.dimension_semantics<parallel>, #tpu.dimension_semantics<parallel>], iteration_bounds = array<i64: 1, 1>, scalar_prefetch = 0 : i64, scratch_operands = 0 : i64, tpu.core_type = #tpu.core_type<tc>, window_params = [{transform_indices = @transform_0, window_bounds = array<i64: 16, 128>}, {transform_indices = @transform_1, window_bounds = array<i64: 16, 128>}, {transform_indices = @transform_2, window_bounds = array<i64: 16, 128>}]} {
    %c0 = arith.constant 0 : index
    %c0_0 = arith.constant 0 : index
    %0 = vector.load %arg2[%c0, %c0_0] : memref<16x128xf32, #tpu.memory_space<vmem>>, vector<16x128xf32>
    %c0_1 = arith.constant 0 : index
    %c0_2 = arith.constant 0 : index
    %1 = vector.load %arg3[%c0_1, %c0_2] : memref<16x128xf32, #tpu.memory_space<vmem>>, vector<16x128xf32>
    %2 = arith.negf %0 : vector<16x128xf32>
    %3 = math.exp %2 : vector<16x128xf32>
    %cst = arith.constant 1.000000e+00 : f32
    %4 = vector.broadcast %cst : f32 to vector<16x128xf32>
    %5 = arith.addf %4, %3 : vector<16x128xf32>
    %6 = arith.divf %4, %5 : vector<16x128xf32>
    %cst_3 = arith.constant 1.000000e+00 : f32
    %7 = vector.broadcast %cst_3 : f32 to vector<16x128xf32>
    %8 = arith.subf %7, %6 : vector<16x128xf32>
    %cst_4 = arith.constant 9.99999993E-9 : f32
    %9 = vector.broadcast %cst_4 : f32 to vector<16x128xf32>
    %10 = arith.maximumf %6, %9 : vector<16x128xf32>
    %11 = math.log %10 : vector<16x128xf32>
    %cst_5 = arith.constant 9.99999993E-9 : f32
    %12 = vector.broadcast %cst_5 : f32 to vector<16x128xf32>
    %13 = arith.maximumf %8, %12 : vector<16x128xf32>
    %14 = math.log %13 : vector<16x128xf32>
    %15 = arith.mulf %8, %8 : vector<16x128xf32>
    %16 = arith.mulf %6, %6 : vector<16x128xf32>
    %cst_6 = arith.constant -3.000000e+00 : f32
    %17 = vector.broadcast %cst_6 : f32 to vector<16x128xf32>
    %18 = arith.mulf %17, %15 : vector<16x128xf32>
    %19 = arith.mulf %18, %1 : vector<16x128xf32>
    %20 = arith.mulf %19, %11 : vector<16x128xf32>
    %cst_7 = arith.constant 0.000000e+00 : f32
    %21 = vector.broadcast %cst_7 : f32 to vector<16x128xf32>
    %22 = arith.subf %21, %16 : vector<16x128xf32>
    %cst_8 = arith.constant 1.000000e+00 : f32
    %23 = vector.broadcast %cst_8 : f32 to vector<16x128xf32>
    %24 = arith.subf %23, %1 : vector<16x128xf32>
    %25 = arith.mulf %22, %24 : vector<16x128xf32>
    %26 = arith.mulf %25, %14 : vector<16x128xf32>
    %27 = arith.addf %20, %26 : vector<16x128xf32>
    %c0_9 = arith.constant 0 : index
    %c0_10 = arith.constant 0 : index
    %28 = vector.load %arg4[%c0_9, %c0_10] : memref<16x128xf32, #tpu.memory_space<vmem>>, vector<16x128xf32>
    tpu.vector_store %arg4[%c0_9, %c0_10], %27 {strides = array<i32>} : memref<16x128xf32, #tpu.memory_space<vmem>>, vector<16x128xf32>,
    return
  }
  func.func @transform_0(%arg0: i32, %arg1: i32) -> (i32, i32) {
    %c0_i32 = arith.constant 0 : i32
    return %arg0, %arg1 : i32, i32
  }
  func.func @transform_1(%arg0: i32, %arg1: i32) -> (i32, i32) {
    %c0_i32 = arith.constant 0 : i32
    return %arg0, %arg1 : i32, i32
  }
  func.func @transform_2(%arg0: i32, %arg1: i32) -> (i32, i32) {
    %c0_i32 = arith.constant 0 : i32
    return %arg0, %arg1 : i32, i32
  }
}

</mosaic_0001>

<llo_original>
// kernel: tpu_custom_call.1
$region0: #{tpu_custom_call.1}
  #allocation0 [shape = 'u32[]', space=smem, size = 0x4, offset = 0x4, fixed_abs, tag = 'smem constant byte address 0x4 - core index']
  #allocation1 [shape = 'u32[144,128]{1,0:T(1,128)}', space=vmem, size = 0x12000, scoped, tag = 'internal scratch']
  %s0 = inlined_call_operand.hbm [shape: f32[16,128], index: 0, kind: input, shape index: {}]
  %s1 = inlined_call_operand.hbm [shape: f32[16,128], index: 1, kind: input, shape index: {}]
  %s2 = inlined_call_operand.hbm [shape: f32[16,128], index: 2, kind: output, shape index: {}]
  %s3 = sld [smem:[#allocation0]]
  $region26: #{tpu_custom_call.1} parent=0
    _
  %s5 = ssub.s32 1, %s3
  %s6 = scalar_select 0, %s5, %s3
  $region1: #{tpu_custom_call.1} parent=0
    #allocation2 [shape = 'u8[8192]{0}', space=vmem, size = 0x2000, scoped, tag = 'input window, operand 0, single buffered']
    #allocation3 [shape = 's32[1]{0}', space=sflag, size = 0x4, scoped, tag = 'scoped memory for tpu_custom_call.1']
    #allocation4 [shape = 's32[1]{0}', space=sflag, size = 0x4, scoped, tag = 'scoped memory for tpu_custom_call.1']
    #allocation5 [shape = 'u8[8192]{0}', space=vmem, size = 0x2000, scoped, tag = 'input window, operand 1, single buffered']
    #allocation6 [shape = 's32[1]{0}', space=sflag, size = 0x4, scoped, tag = 'scoped memory for tpu_custom_call.1']
    #allocation7 [shape = 'u8[8192]{0}', space=vmem, size = 0x2000, scoped, tag = 'output window, operand 0, single buffered']
    %7 = vsyncpa [#allocation3], 0
    %8 = vsyncpa [#allocation6], 0
    %9 = vsyncpa [#allocation4], 0
    // Predicated region
    $region2: #{tpu_custom_call.1} parent=1 // pred_check
      _
    $region3: #{tpu_custom_call.1} parent=1 // pred_check_branch
      %11 = sbr.rel (0) target = $region5
    $region4: #{tpu_custom_call.1} parent=1 // pred_region
      %s13 = ssub.s32 256, 256
      %14 = vsyncadd [#allocation3], %s13
      %s15 = sshll.u32 [#allocation2], 4
      %s16 = int_to_ptr.vmem [resolvable:$true] %s15
      %21 = dma.hbm_to_vmem [thread:$0]  %s0, 256, %s16, [#allocation3], 128, 128, 8
    $region5: #{tpu_custom_call.1} parent=1 // pred_fallthru
      _
    // Predicated region
    $region6: #{tpu_custom_call.1} parent=1 // pred_check
      _
    $region7: #{tpu_custom_call.1} parent=1 // pred_check_branch
      %23 = sbr.rel (0) target = $region9
    $region8: #{tpu_custom_call.1} parent=1 // pred_region
      %s25 = ssub.s32 256, 256
      %26 = vsyncadd [#allocation6], %s25
      %s27 = sshll.u32 [#allocation5], 4
      %s28 = int_to_ptr.vmem [resolvable:$true] %s27
      %33 = dma.hbm_to_vmem [thread:$0]  %s1, 256, %s28, [#allocation6], 128, 128, 8
    $region9: #{tpu_custom_call.1} parent=1 // pred_fallthru
      _
    // Predicated region
    $region10: #{tpu_custom_call.1} parent=1 // pred_check
      _
    $region11: #{tpu_custom_call.1} parent=1 // pred_check_branch
      %35 = sbr.rel (0) target = $region13
    $region12: #{tpu_custom_call.1} parent=1 // pred_region
      %36 = dma.done [#allocation3], 256
    $region13: #{tpu_custom_call.1} parent=1 // pred_fallthru
      _
    // Predicated region
    $region14: #{tpu_custom_call.1} parent=1 // pred_check
      _
    $region15: #{tpu_custom_call.1} parent=1 // pred_check_branch
      %38 = sbr.rel (0) target = $region17
    $region16: #{tpu_custom_call.1} parent=1 // pred_region
      %39 = dma.done [#allocation6], 256
    $region17: #{tpu_custom_call.1} parent=1 // pred_fallthru
      _
    %v40 = vld [vmem:[#allocation2] sm:$0xff]
    %v41 = vld [vmem:[#allocation2 + $0x8] sm:$0xff]
    %v42 = vld [vmem:[#allocation5] sm:$0xff]
    %v43 = vld [vmem:[#allocation5 + $0x8] sm:$0xff]
    %v44 = vxor.u32 %v40, 2147483648
    %v45 = vxor.u32 %v41, 2147483648
    %v46 = vmul.f32 %v44, 1.442695
    %v47 = vpow.pop %v46
    %v48 = vmul.f32 %v45, 1.442695
    %v49 = vpow.pop %v48
    %v50 = vadd.f32 %v47, 1.0
    %v51 = vadd.f32 %v49, 1.0
    %v52 = vrcp.pop %v50
    %v53 = vmul.f32 1.0, %v52
    %v54 = vrcp.pop %v51
    %v55 = vmul.f32 1.0, %v54
    %v56 = vsub.f32 1.0, %v53
    %v57 = vsub.f32 1.0, %v55
    %v58 = vmax.f32 %v53, 1e-08
    %v59 = vmax.f32 %v55, 1e-08
    %v60 = vlog2.pop %v58
    %v61 = vmul.f32 %v60, 0.6931472
    %v62 = vlog2.pop %v59
    %v63 = vmul.f32 %v62, 0.6931472
    %v64 = vmax.f32 %v56, 1e-08
    %v65 = vmax.f32 %v57, 1e-08
    %v66 = vlog2.pop %v64
    %v67 = vmul.f32 %v66, 0.6931472
    %v68 = vlog2.pop %v65
    %v69 = vmul.f32 %v68, 0.6931472
    %v70 = vmul.f32 %v56, %v56
    %v71 = vmul.f32 %v57, %v57
    %v72 = vmul.f32 %v53, %v53
    %v73 = vmul.f32 %v55, %v55
    %v74 = vmul.f32 %v70, -3.0
    %v75 = vmul.f32 %v71, -3.0
    %v76 = vmul.f32 %v74, %v42
    %v77 = vmul.f32 %v75, %v43
    %v78 = vmul.f32 %v76, %v61
    %v79 = vmul.f32 %v77, %v63
    %v80 = vsub.f32 0.0, %v72
    %v81 = vsub.f32 0.0, %v73
    %v82 = vsub.f32 1.0, %v42
    %v83 = vsub.f32 1.0, %v43
    %v84 = vmul.f32 %v80, %v82
    %v85 = vmul.f32 %v81, %v83
    %v86 = vmul.f32 %v84, %v67
    %v87 = vmul.f32 %v85, %v69
    %v88 = vadd.f32 %v78, %v86
    %v89 = vadd.f32 %v79, %v87
    %90 = vst [vmem:[#allocation7] sm:$0xff] %v88
    %91 = vst [vmem:[#allocation7 + $0x8] sm:$0xff] %v89
    // Predicated region
    $region18: #{tpu_custom_call.1} parent=1 // pred_check
      _
    $region19: #{tpu_custom_call.1} parent=1 // pred_check_branch
      %93 = sbr.rel (0) target = $region21
    $region20: #{tpu_custom_call.1} parent=1 // pred_region
      %s95 = ssub.s32 256, 256
      %96 = vsyncadd [#allocation4], %s95
      %s97 = sshll.u32 [#allocation7], 4
      %s98 = int_to_ptr.vmem [resolvable:$true] %s97
      %103 = dma.vmem_to_hbm [thread:$0]  %s98, 256, %s2, [#allocation4], 128, 128, 8
    $region21: #{tpu_custom_call.1} parent=1 // pred_fallthru
      _
    // Predicated region
    $region22: #{tpu_custom_call.1} parent=1 // pred_check
      _
    $region23: #{tpu_custom_call.1} parent=1 // pred_check_branch
      %105 = sbr.rel (0) target = $region25
    $region24: #{tpu_custom_call.1} parent=1 // pred_region
      %106 = dma.done [#allocation4], 256
    $region25: #{tpu_custom_call.1} parent=1 // pred_fallthru
      _
    %107 = vsyncpa [#allocation3], 1
    %108 = vsyncpa [#allocation6], 1
    %109 = vsyncpa [#allocation4], 1

</llo_original>
